<compile_context>
chip_gen: v5e
topology: v5e:2x2
jax: 0.10.0
libtpu: 0.0.40
codegen_flags: <defaults>
</compile_context>

<pallas_src>
import jax
import jax.numpy as jnp
from jax import lax
from jax.experimental import pallas as pl
from jax.experimental.pallas import tpu as pltpu


def patch_embed_kernel(xp_ref, w_ref, b_ref, o_ref):
    """One grid step: (tile_n, Kp) bf16 patches @ (Kp, E) bf16 weight, f32 acc + bias."""
    acc = jnp.dot(xp_ref[...], w_ref[...],
                  preferred_element_type=jnp.float32)   # MXU, f32 accumulate
    o_ref[...] = (acc + b_ref[...]).astype(o_ref.dtype)  # bias add in f32


def _round_up(x, m):
    return ((x + m - 1) // m) * m


def _pick_token_tile(m):
    """Fixed 8-aligned tile: 256..512 rows, chosen to minimize zero-padding."""
    if m <= 256:
        return _round_up(m, 8)
    best_t, best_pad = None, None
    for t in (512, 448, 384, 320, 256):
        pad = _round_up(m, t) - m
        if best_pad is None or pad < best_pad:
            best_t, best_pad = t, pad
    return best_t


def patch_embed(x, weight, bias, patch_size, out_dtype=jnp.bfloat16):
    """x: (B, C, H, W); weight: (E, C, p, p) PyTorch Conv2d layout; bias: (E,)."""
    B, C, H, W = x.shape
    p = patch_size
    gh, gw = H // p, W // p
    N = gh * gw
    E = weight.shape[0]
    K = C * p * p
    M = B * N

    # Cast to bf16 FIRST so the im2col transpose moves half the HBM bytes.
    # Patch-vector order is (c, kh, kw) to match Conv2d's weight.reshape(E, C*p*p).
    xb = x.astype(jnp.bfloat16)
    xp = xb.reshape(B, C, gh, p, gw, p).transpose(0, 2, 4, 1, 3, 5).reshape(M, K)
    w_t = weight.reshape(E, K).T.astype(jnp.bfloat16)   # (K, E): kernel does xp @ W
    b2d = bias.reshape(1, E).astype(jnp.float32)        # bias stays f32

    # Lane-align K and pick a fixed aligned token tile; zero-pad both dims.
    K_pad = _round_up(K, 128)
    tile_n = _pick_token_tile(M)
    M_pad = _round_up(M, tile_n)
    xp = jnp.pad(xp, ((0, M_pad - M), (0, K_pad - K)))
    w_p = jnp.pad(w_t, ((0, K_pad - K), (0, 0)))

    grid_steps = M_pad // tile_n
    out_itemsize = jnp.dtype(out_dtype).itemsize

    # 3-deep input pipelining only when there are enough grid steps to benefit.
    if grid_steps >= 4:
        xp_spec = pl.BlockSpec((tile_n, K_pad), lambda t: (t, 0),
                               pipeline_mode=pl.Buffered(3))
        xp_bufs = 3
    else:
        xp_spec = pl.BlockSpec((tile_n, K_pad), lambda t: (t, 0))
        xp_bufs = 2

    # Right-sized VMEM budget: buffered xp + out tiles, resident W/bias, 2x margin.
    working_set = (xp_bufs * tile_n * K_pad * 2        # xp tiles (bf16)
                   + 2 * tile_n * E * out_itemsize     # out tiles
                   + 2 * K_pad * E * 2                 # weight (bf16)
                   + 2 * E * 4)                        # bias (f32)
    vmem_limit = int(min(32 * 1024 * 1024, max(4 * 1024 * 1024, 2 * working_set)))

    cost = pl.CostEstimate(
        flops=int(2 * M_pad * K_pad * E),
        transcendentals=0,
        bytes_accessed=int(xp.size * 2 + w_p.size * 2 + b2d.size * 4
                           + M_pad * E * out_itemsize),
    )

    out = pl.pallas_call(
        patch_embed_kernel,
        out_shape=jax.ShapeDtypeStruct((M_pad, E), out_dtype),
        grid=(grid_steps,),
        in_specs=[
            xp_spec,                                      # token tile
            pl.BlockSpec((K_pad, E), lambda t: (0, 0)),   # weight (resident)
            pl.BlockSpec((1, E), lambda t: (0, 0)),       # bias   (resident)
        ],
        out_specs=pl.BlockSpec((tile_n, E), lambda t: (t, 0)),
        compiler_params=pltpu.CompilerParams(
            dimension_semantics=("parallel",),
            vmem_limit_bytes=vmem_limit,
        ),
        cost_estimate=cost,
    )(xp, w_p, b2d)

    return out[:M].reshape(B, N, E)


def patch_embed_ref(x, weight, bias, patch_size):
    """Pure-JAX reference mirroring PatchEmbed.forward (Conv2d -> flatten -> transpose)."""
    p = patch_size
    y = lax.conv_general_dilated(
        x, weight, window_strides=(p, p), padding="VALID",
        dimension_numbers=("NCHW", "OIHW", "NCHW"))       # (B, E, gh, gw)
    B, E, gh, gw = y.shape
    y = y.reshape(B, E, gh * gw).transpose(0, 2, 1)       # (B, N, E)
    return y + bias.reshape(1, 1, E)


if __name__ == "__main__":
    # Small-but-representative shapes: C=3 channels, 32x32 image, 8x8 patches
    # -> 16 tokens/image, embed_dim=128 (lane-dense output), K = 3*8*8 = 192 (-> 256 padded).
    B, C, H, W = 2, 3, 32, 32
    patch_size = 8
    embed_dim = 128

    key = jax.random.PRNGKey(0)
    kx, kw, kb = jax.random.split(key, 3)

    x = jax.random.normal(kx, (B, C, H, W), jnp.float32)
    weight = 0.02 * jax.random.normal(kw, (embed_dim, C, patch_size, patch_size),
                                      jnp.float32)        # PyTorch Conv2d layout
    bias = 0.02 * jax.random.normal(kb, (embed_dim,), jnp.float32)

    out = patch_embed(x, weight, bias, patch_size)         # bf16 output by default
    out = jax.block_until_ready(out)

    ref = patch_embed_ref(x, weight, bias, patch_size)

    num_patches = (H // patch_size) * (W // patch_size)
    assert out.shape == (B, num_patches, embed_dim), out.shape
    # bf16 MXU operands + bf16 output => looser tolerance vs the f32 reference.
    assert jnp.allclose(out.astype(jnp.float32), ref, atol=5e-2, rtol=5e-2), (
        float(jnp.max(jnp.abs(out.astype(jnp.float32) - ref))))

    print("KERNEL_OK")
</pallas_src>

<mosaic_0001>
module attributes {stable_mosaic.version = 11 : i64} {
  func.func @patch_embed_kernel(%arg0: i32, %arg1: memref<32x256xbf16, #tpu.memory_space<vmem>>, %arg2: memref<256x128xbf16, #tpu.memory_space<vmem>>, %arg3: memref<1x128xf32, #tpu.memory_space<vmem>>, %arg4: memref<32x128xbf16, #tpu.memory_space<vmem>>) attributes {dimension_semantics = [#tpu.dimension_semantics<parallel>], iteration_bounds = array<i64: 1>, scalar_prefetch = 0 : i64, scratch_operands = 0 : i64, tpu.core_type = #tpu.core_type<tc>, window_params = [{transform_indices = @transform_0, window_bounds = array<i64: 32, 256>}, {pipeline_mode = #tpu.pipeline_mode<synchronous>, transform_indices = @transform_1, window_bounds = array<i64: 256, 128>}, {pipeline_mode = #tpu.pipeline_mode<synchronous>, transform_indices = @transform_2, window_bounds = array<i64: 1, 128>}, {transform_indices = @transform_3, window_bounds = array<i64: 32, 128>}]} {
    %c0 = arith.constant 0 : index
    %c0_0 = arith.constant 0 : index
    %0 = vector.load %arg1[%c0, %c0_0] : memref<32x256xbf16, #tpu.memory_space<vmem>>, vector<32x256xbf16>
    %c0_1 = arith.constant 0 : index
    %c0_2 = arith.constant 0 : index
    %1 = vector.load %arg2[%c0_1, %c0_2] : memref<256x128xbf16, #tpu.memory_space<vmem>>, vector<256x128xbf16>
    %cst = arith.constant dense<0.000000e+00> : vector<32x128xf32>
    %2 = tpu.matmul %0, %1, %cst {dimension_numbers = #tpu.dot_dimension_numbers<[1], [0], [0], [1], [0, 0, 1, 1], [], []>} : vector<32x256xbf16>, vector<256x128xbf16>, vector<32x128xf32> -> vector<32x128xf32>
    %c0_3 = arith.constant 0 : index
    %c0_4 = arith.constant 0 : index
    %3 = vector.load %arg3[%c0_3, %c0_4] : memref<1x128xf32, #tpu.memory_space<vmem>>, vector<1x128xf32>
    %4 = vector.broadcast %3 : vector<1x128xf32> to vector<32x128xf32>
    %5 = arith.addf %2, %4 : vector<32x128xf32>
    %6 = arith.truncf %5 : vector<32x128xf32> to vector<32x128xbf16>
    %c0_5 = arith.constant 0 : index
    %c0_6 = arith.constant 0 : index
    %7 = vector.load %arg4[%c0_5, %c0_6] : memref<32x128xbf16, #tpu.memory_space<vmem>>, vector<32x128xbf16>
    tpu.vector_store %arg4[%c0_5, %c0_6], %6 {strides = array<i32>} : memref<32x128xbf16, #tpu.memory_space<vmem>>, vector<32x128xbf16>,
    return
  }
  func.func @transform_0(%arg0: i32) -> (i32, i32) {
    %c0_i32 = arith.constant 0 : i32
    %c0_i32_0 = arith.constant 0 : i32
    return %arg0, %c0_i32 : i32, i32
  }
  func.func @transform_1(%arg0: i32) -> (i32, i32) {
    %c0_i32 = arith.constant 0 : i32
    %c0_i32_0 = arith.constant 0 : i32
    %c0_i32_1 = arith.constant 0 : i32
    return %c0_i32, %c0_i32_0 : i32, i32
  }
  func.func @transform_2(%arg0: i32) -> (i32, i32) {
    %c0_i32 = arith.constant 0 : i32
    %c0_i32_0 = arith.constant 0 : i32
    %c0_i32_1 = arith.constant 0 : i32
    return %c0_i32, %c0_i32_0 : i32, i32
  }
  func.func @transform_3(%arg0: i32) -> (i32, i32) {
    %c0_i32 = arith.constant 0 : i32
    %c0_i32_0 = arith.constant 0 : i32
    return %arg0, %c0_i32 : i32, i32
  }
}

</mosaic_0001>

<llo_original>
// kernel: tpu_custom_call.1
$region0: #{tpu_custom_call.1}
  #allocation0 [shape = 'u32[]', space=smem, size = 0x4, offset = 0x4, fixed_abs, tag = 'smem constant byte address 0x4 - core index']
  #allocation1 [shape = 'u32[72,128]{1,0:T(1,128)}', space=vmem, size = 0x9000, scoped, tag = 'internal scratch']
  %s0 = inlined_call_operand.hbm [shape: bf16[32,256], index: 0, kind: input, shape index: {}]
  %s1 = inlined_call_operand.hbm [shape: bf16[256,128], index: 1, kind: input, shape index: {}]
  %s2 = inlined_call_operand.vmem [shape: f32[1,128], index: 2, kind: input, shape index: {}]
  %s3 = inlined_call_operand.hbm [shape: bf16[32,128], index: 3, kind: output, shape index: {}]
  %s4 = sld [smem:[#allocation0]]
  $region30: #{tpu_custom_call.1} parent=0
    _
  %s6 = ssub.s32 1, %s4
  %s7 = scalar_select 0, %s6, %s4
  $region1: #{tpu_custom_call.1} parent=0
    #allocation2 [shape = 'u8[16384]{0}', space=vmem, size = 0x4000, scoped, tag = 'input window, operand 0, single buffered']
    #allocation3 [shape = 's32[1]{0}', space=sflag, size = 0x4, scoped, tag = 'scoped memory for tpu_custom_call.1']
    #allocation4 [shape = 's32[1]{0}', space=sflag, size = 0x4, scoped, tag = 'scoped memory for tpu_custom_call.1']
    #allocation5 [shape = 'u8[65536]{0}', space=vmem, size = 0x10000, scoped, tag = 'input window, operand 1, single buffered']
    #allocation6 [shape = 's32[1]{0}', space=sflag, size = 0x4, scoped, tag = 'scoped memory for tpu_custom_call.1']
    #allocation7 [shape = 'u8[8192]{0}', space=vmem, size = 0x2000, scoped, tag = 'output window, operand 0, single buffered']
    %8 = vsyncpa [#allocation3], 0
    %9 = vsyncpa [#allocation6], 0
    %10 = vsyncpa [#allocation4], 0
    // Predicated region
    $region2: #{tpu_custom_call.1} parent=1 // pred_check
      _
    $region3: #{tpu_custom_call.1} parent=1 // pred_check_branch
      %12 = sbr.rel (0) target = $region5
    $region4: #{tpu_custom_call.1} parent=1 // pred_region
      %14 = vsyncadd [#allocation3], 0
      %s15 = sshll.u32 %s0, 4
      %s16 = int_to_ptr.hbm [resolvable:$true] %s15
      %s17 = sshll.u32 [#allocation2], 4
      %s18 = int_to_ptr.vmem [resolvable:$true] %s17
      %23 = dma.hbm_to_vmem [thread:$0]  %s16, 512, %s18, [#allocation3], 128, 128, 8
    $region5: #{tpu_custom_call.1} parent=1 // pred_fallthru
      _
    // Predicated region
    $region6: #{tpu_custom_call.1} parent=1 // pred_check
      _
    $region7: #{tpu_custom_call.1} parent=1 // pred_check_branch
      %25 = sbr.rel (0) target = $region9
    $region8: #{tpu_custom_call.1} parent=1 // pred_region
      %27 = vsyncadd [#allocation6], 0
      %s28 = sshll.u32 %s1, 4
      %s29 = int_to_ptr.hbm [resolvable:$true] %s28
      %s30 = sshll.u32 [#allocation5], 4
      %s31 = int_to_ptr.vmem [resolvable:$true] %s30
      %36 = dma.hbm_to_vmem [thread:$0]  %s29, 2048, %s31, [#allocation6], 64, 64, 4
    $region9: #{tpu_custom_call.1} parent=1 // pred_fallthru
      _
    // Predicated region
    $region10: #{tpu_custom_call.1} parent=1 // pred_check
      _
    $region11: #{tpu_custom_call.1} parent=1 // pred_check_branch
      %38 = sbr.rel (0) target = $region13
    $region12: #{tpu_custom_call.1} parent=1 // pred_region
      _
    $region13: #{tpu_custom_call.1} parent=1 // pred_fallthru
      _
    // Predicated region
    $region14: #{tpu_custom_call.1} parent=1 // pred_check
      _
    $region15: #{tpu_custom_call.1} parent=1 // pred_check_branch
      %40 = sbr.rel (0) target = $region17
    $region16: #{tpu_custom_call.1} parent=1 // pred_region
      %42 = dma.done [#allocation3], 512
    $region17: #{tpu_custom_call.1} parent=1 // pred_fallthru
      _
    // Predicated region
    $region18: #{tpu_custom_call.1} parent=1 // pred_check
      _
    $region19: #{tpu_custom_call.1} parent=1 // pred_check_branch
      %44 = sbr.rel (0) target = $region21
    $region20: #{tpu_custom_call.1} parent=1 // pred_region
      %46 = dma.done [#allocation6], 2048
    $region21: #{tpu_custom_call.1} parent=1 // pred_fallthru
      _
    %v47 = vld [vmem:[#allocation2] sm:$0xff]
    %v48 = vld [vmem:[#allocation2 + $0x8] sm:$0xff]
    %v49 = vld [vmem:[#allocation2 + $0x10] sm:$0xff]
    %v50 = vld [vmem:[#allocation2 + $0x18] sm:$0xff]
    %v51 = vld [vmem:[#allocation5] sm:$0xf]
    %v52 = vld [vmem:[#allocation5 + $0x4] sm:$0xf]
    %v53 = vld [vmem:[#allocation5 + $0x8] sm:$0xf]
    %v54 = vld [vmem:[#allocation5 + $0xc] sm:$0xf]
    %v55 = vld [vmem:[#allocation5 + $0x10] sm:$0xf]
    %v56 = vld [vmem:[#allocation5 + $0x14] sm:$0xf]
    %v57 = vld [vmem:[#allocation5 + $0x18] sm:$0xf]
    %v58 = vld [vmem:[#allocation5 + $0x1c] sm:$0xf]
    %v59 = vld [vmem:[#allocation5 + $0x20] sm:$0xf]
    %v60 = vld [vmem:[#allocation5 + $0x24] sm:$0xf]
    %v61 = vld [vmem:[#allocation5 + $0x28] sm:$0xf]
    %v62 = vld [vmem:[#allocation5 + $0x2c] sm:$0xf]
    %v63 = vld [vmem:[#allocation5 + $0x30] sm:$0xf]
    %v64 = vld [vmem:[#allocation5 + $0x34] sm:$0xf]
    %v65 = vld [vmem:[#allocation5 + $0x38] sm:$0xf]
    %v66 = vld [vmem:[#allocation5 + $0x3c] sm:$0xf]
    %v67 = vld [vmem:[#allocation5 + $0x40] sm:$0xf]
    %v68 = vld [vmem:[#allocation5 + $0x44] sm:$0xf]
    %v69 = vld [vmem:[#allocation5 + $0x48] sm:$0xf]
    %v70 = vld [vmem:[#allocation5 + $0x4c] sm:$0xf]
    %v71 = vld [vmem:[#allocation5 + $0x50] sm:$0xf]
    %v72 = vld [vmem:[#allocation5 + $0x54] sm:$0xf]
    %v73 = vld [vmem:[#allocation5 + $0x58] sm:$0xf]
    %v74 = vld [vmem:[#allocation5 + $0x5c] sm:$0xf]
    %v75 = vld [vmem:[#allocation5 + $0x60] sm:$0xf]
    %v76 = vld [vmem:[#allocation5 + $0x64] sm:$0xf]
    %v77 = vld [vmem:[#allocation5 + $0x68] sm:$0xf]
    %v78 = vld [vmem:[#allocation5 + $0x6c] sm:$0xf]
    %v79 = vld [vmem:[#allocation5 + $0x70] sm:$0xf]
    %v80 = vld [vmem:[#allocation5 + $0x74] sm:$0xf]
    %v81 = vld [vmem:[#allocation5 + $0x78] sm:$0xf]
    %v82 = vld [vmem:[#allocation5 + $0x7c] sm:$0xf]
    %v83 = vld [vmem:[%s2] sm:$0x1]
    %v85 = vperm.slane %v83, 0
    %v91 = vunpack.c.l.b16 %v47
    %v92 = vunpack.c.h.b16 %v47
    %v93 = vunpack.c.l.b16 %v48
    %v94 = vunpack.c.h.b16 %v48
    %v95 = vunpack.c.l.b16 %v49
    %v96 = vunpack.c.h.b16 %v49
    %v97 = vunpack.c.l.b16 %v50
    %v98 = vunpack.c.h.b16 %v50
    %v99 = vpack.c.b16 %v93, %v91
    %v100 = vpack.c.b16 %v94, %v92
    %v101 = vpack.c.b16 %v97, %v95
    %v102 = vpack.c.b16 %v98, %v96
    %v139 = vunpack.c.l.b16 %v51
    %v140 = vunpack.c.l.b16 %v52
    %v141 = vunpack.c.l.b16 %v53
    %v142 = vunpack.c.l.b16 %v54
    %v143 = vunpack.c.l.b16 %v55
    %v144 = vunpack.c.l.b16 %v56
    %v145 = vunpack.c.l.b16 %v57
    %v146 = vunpack.c.l.b16 %v58
    %v147 = vunpack.c.l.b16 %v59
    %v148 = vunpack.c.l.b16 %v60
    %v149 = vunpack.c.l.b16 %v61
    %v150 = vunpack.c.l.b16 %v62
    %v151 = vunpack.c.l.b16 %v63
    %v152 = vunpack.c.l.b16 %v64
    %v153 = vunpack.c.l.b16 %v65
    %v154 = vunpack.c.l.b16 %v66
    %v155 = vunpack.c.l.b16 %v67
    %v156 = vunpack.c.l.b16 %v68
    %v157 = vunpack.c.l.b16 %v69
    %v158 = vunpack.c.l.b16 %v70
    %v159 = vunpack.c.l.b16 %v71
    %v160 = vunpack.c.l.b16 %v72
    %v161 = vunpack.c.l.b16 %v73
    %v162 = vunpack.c.l.b16 %v74
    %v163 = vunpack.c.l.b16 %v75
    %v164 = vunpack.c.l.b16 %v76
    %v165 = vunpack.c.l.b16 %v77
    %v166 = vunpack.c.l.b16 %v78
    %v167 = vunpack.c.l.b16 %v79
    %v168 = vunpack.c.l.b16 %v80
    %v169 = vunpack.c.l.b16 %v81
    %v170 = vunpack.c.l.b16 %v82
    %v171 = vpack.c.b16 %v140, %v139
    %v172 = vpack.c.b16 %v142, %v141
    %v173 = vpack.c.b16 %v144, %v143
    %v174 = vpack.c.b16 %v146, %v145
    %v175 = vpack.c.b16 %v148, %v147
    %v176 = vpack.c.b16 %v150, %v149
    %v177 = vpack.c.b16 %v152, %v151
    %v178 = vpack.c.b16 %v154, %v153
    %v179 = vpack.c.b16 %v156, %v155
    %v180 = vpack.c.b16 %v158, %v157
    %v181 = vpack.c.b16 %v160, %v159
    %v182 = vpack.c.b16 %v162, %v161
    %v183 = vpack.c.b16 %v164, %v163
    %v184 = vpack.c.b16 %v166, %v165
    %v185 = vpack.c.b16 %v168, %v167
    %v186 = vpack.c.b16 %v170, %v169
    %203 = vmatpush.bf16.msra.mxu0 %v178
    %204 = vmatpush.bf16.msra.mxu0 %v177
    %205 = vmatpush.bf16.msra.mxu0 %v176
    %206 = vmatpush.bf16.msra.mxu0 %v175
    %207 = vmatpush.bf16.msra.mxu0 %v174
    %208 = vmatpush.bf16.msra.mxu0 %v173
    %209 = vmatpush.bf16.msra.mxu0 %v172
    %210 = vmatpush.bf16.msra.mxu0 %v171
    %211 = vmatmul.bf16.gmra.mxu0 %v99
    %v212 = vpop.f32.mrf.mxu0
    %v213 = vadd.f32 %v85, %v212
    %v214 = vpop.f32.mrf.mxu0
    %v215 = vadd.f32 %v85, %v214
    %216 = vmatmul.bf16.gmra.mxu0 %v101
    %v217 = vpop.f32.mrf.mxu0
    %v218 = vadd.f32 %v85, %v217
    %v219 = vpop.f32.mrf.mxu0
    %v220 = vadd.f32 %v85, %v219
    %221 = vdwg.mxu0
    %222 = vmatpush.bf16.msra.mxu0 %v186
    %223 = vmatpush.bf16.msra.mxu0 %v185
    %224 = vmatpush.bf16.msra.mxu0 %v184
    %225 = vmatpush.bf16.msra.mxu0 %v183
    %226 = vmatpush.bf16.msra.mxu0 %v182
    %227 = vmatpush.bf16.msra.mxu0 %v181
    %228 = vmatpush.bf16.msra.mxu0 %v180
    %229 = vmatpush.bf16.msra.mxu0 %v179
    %230 = vmatmul.bf16.gmra.mxu0 %v100
    %v231 = vpop.f32.mrf.mxu0
    %v232 = vadd.f32 %v213, %v231
    %v233 = vpop.f32.mrf.mxu0
    %v234 = vadd.f32 %v215, %v233
    %235 = vmatmul.bf16.gmra.mxu0 %v102
    %v236 = vpop.f32.mrf.mxu0
    %v237 = vadd.f32 %v218, %v236
    %v238 = vpop.f32.mrf.mxu0
    %v239 = vadd.f32 %v220, %v238
    %240 = vdwg.mxu0
    %v241 = vpack.c.bf16 %v232, %v232
    %v242 = vpack.c.bf16 %v234, %v234
    %v243 = vpack.c.bf16 %v237, %v237
    %v244 = vpack.c.bf16 %v239, %v239
    %245 = vst [vmem:[#allocation7] sm:$0xf] %v241
    %246 = vst [vmem:[#allocation7 + $0x4] sm:$0xf] %v242
    %247 = vst [vmem:[#allocation7 + $0x8] sm:$0xf] %v243
    %248 = vst [vmem:[#allocation7 + $0xc] sm:$0xf] %v244
    // Predicated region
    $region22: #{tpu_custom_call.1} parent=1 // pred_check
      _
    $region23: #{tpu_custom_call.1} parent=1 // pred_check_branch
      %250 = sbr.rel (0) target = $region25
    $region24: #{tpu_custom_call.1} parent=1 // pred_region
      %252 = vsyncadd [#allocation4], 0
      %s253 = sshll.u32 [#allocation7], 4
      %s254 = int_to_ptr.vmem [resolvable:$true] %s253
      %s255 = sshll.u32 %s3, 4
      %s256 = int_to_ptr.hbm [resolvable:$true] %s255
      %261 = dma.vmem_to_hbm [thread:$0]  %s254, 256, %s256, [#allocation4], 64, 64, 4
    $region25: #{tpu_custom_call.1} parent=1 // pred_fallthru
      _
    // Predicated region
    $region26: #{tpu_custom_call.1} parent=1 // pred_check
      _
    $region27: #{tpu_custom_call.1} parent=1 // pred_check_branch
      %263 = sbr.rel (0) target = $region29
    $region28: #{tpu_custom_call.1} parent=1 // pred_region
      %265 = dma.done [#allocation4], 256
    $region29: #{tpu_custom_call.1} parent=1 // pred_fallthru
      _
    %266 = vsyncpa [#allocation3], 1
    %267 = vsyncpa [#allocation6], 1
    %268 = vsyncpa [#allocation4], 1

</llo_original>
